<compile_context>
chip_gen: v5e
topology: v5e:2x2
jax: 0.10.0
libtpu: 0.0.40
codegen_flags: <defaults>
</compile_context>

<pallas_src>
import jax
import jax.numpy as jnp
from jax import lax
from jax.experimental import pallas as pl
from jax.experimental.pallas import tpu as pltpu

LN_EPS = 1e-5          # PyTorch nn.LayerNorm default
MAX_SEQ_TILE = 1024    # row-tile cap (multiple of 256 for v6e/v7x MXU)


def _round_up(x, m):
    return (x + m - 1) // m * m


# ----------------------------- Pallas kernel ------------------------------ #
def _embed_kernel(x_ref, pe_ref, w_ref, p_ref, o_ref):
    """One (ts, E) row tile -> (ts, D) output tile.

    x_ref  : (ts, E) bf16   token embeddings (flattened batch*seq rows)
    pe_ref : (ts, E) bf16   sinusoidal positional encodings for this seq tile
    w_ref  : (E, D)  bf16   linear weight, resident across the grid
    p_ref  : (3, D)  f32    packed [bias; ln_gamma; ln_beta], resident
    o_ref  : (ts, D) bf16
    """
    # bf16 add on the VPU; result goes straight to the MXU (no cast round trip).
    xs = x_ref[...] + pe_ref[...]
    # MXU matmul: bf16 operands, f32 accumulation.
    h = jnp.dot(xs, w_ref[...], preferred_element_type=jnp.float32)
    p = p_ref[...]
    h = h + p[0:1, :]                                  # linear bias (f32)
    # Two-pass LayerNorm statistics (numerically safe vs E[h^2]-mean^2).
    mean = jnp.mean(h, axis=-1, keepdims=True)
    c = h - mean
    var = jnp.mean(c * c, axis=-1, keepdims=True)
    inv = lax.rsqrt(var + LN_EPS)
    o_ref[...] = (c * inv * p[1:2, :] + p[2:3, :]).astype(o_ref.dtype)


def transformer_embedding_pallas(x2d, pe, w, packed, *, seq_tile,
                                 seq_tiles_per_batch):
    """x2d: (B*S_pad, E) bf16; pe: (S_pad, E) bf16; w: (E, D) bf16;
    packed: (3, D) f32 = [bias; gamma; beta].  Returns (B*S_pad, D) bf16."""
    R, E = x2d.shape
    D = w.shape[1]
    assert R % seq_tile == 0
    assert pe.shape[0] == seq_tile * seq_tiles_per_batch
    n_row_tiles = R // seq_tile

    if seq_tiles_per_batch == 1:
        pe_map = lambda i: (0, 0)                      # constant block -> no re-DMA
    else:
        pe_map = lambda i: (i % seq_tiles_per_batch, 0)

    return pl.pallas_call(
        _embed_kernel,
        out_shape=jax.ShapeDtypeStruct((R, D), jnp.bfloat16),
        grid_spec=pltpu.PrefetchScalarGridSpec(
            num_scalar_prefetch=0,
            grid=(n_row_tiles,),
            in_specs=[
                pl.BlockSpec((seq_tile, E), lambda i: (i, 0)),   # x rows
                pl.BlockSpec((seq_tile, E), pe_map),             # pe (wraps per batch)
                pl.BlockSpec((E, D), lambda i: (0, 0)),          # weight, resident
                pl.BlockSpec((3, D), lambda i: (0, 0)),          # bias/gamma/beta
            ],
            out_specs=pl.BlockSpec((seq_tile, D), lambda i: (i, 0)),
        ),
        compiler_params=pltpu.CompilerParams(
            dimension_semantics=("parallel",),
        ),
    )(x2d, pe, w, packed)


# ------------------------------- JAX glue --------------------------------- #
def sinusoidal_pe(max_len, d_model):
    pos = jnp.arange(max_len, dtype=jnp.float32)[:, None]           # (L, 1)
    i2 = jnp.arange(0, d_model, 2, dtype=jnp.float32)                # (d/2,)
    div = jnp.exp(-jnp.log(10000.0) * i2 / d_model)                  # (d/2,)
    ang = pos * div                                                  # (L, d/2)
    pe = jnp.zeros((max_len, d_model), jnp.float32)
    pe = pe.at[:, 0::2].set(jnp.sin(ang))
    pe = pe.at[:, 1::2].set(jnp.cos(ang))
    return pe


def transformer_embedding(sequence, params):
    """sequence: (B, S) int32 token ids. Returns (B, S, D) bfloat16."""
    B, S = sequence.shape
    E = params["emb_table"].shape[1]
    D = params["w"].shape[1]

    # Token-embedding gather (XLA glue). Table is bf16, so this emits bf16
    # directly with no f32 round trip.
    # TODO(synk): fuse this gather into the kernel (scalar-prefetch flat ids +
    # per-row DMA gather from the HBM-resident table) to eliminate the
    # (B, S, E) HBM round trip entirely.
    x = jnp.take(params["emb_table"], sequence, axis=0)   # (B, S, E) bf16

    # Row tile: 128-granular (bf16 sublane packing + fat MXU LHS), capped.
    ts = min(MAX_SEQ_TILE, _round_up(S, 128))
    S_pad = _round_up(S, ts)
    if S_pad != S:
        x = jnp.pad(x, ((0, 0), (0, S_pad - S), (0, 0)))
    x2d = x.reshape(B * S_pad, E)

    pe = params["pe"]                                      # (max_len, E) bf16
    if S_pad <= pe.shape[0]:
        pe = pe[:S_pad]
    else:
        pe = jnp.pad(pe, ((0, S_pad - pe.shape[0]), (0, 0)))

    # Dropout is identity in eval mode; king_embedding is None in this config.
    out = transformer_embedding_pallas(
        x2d, pe, params["w"], params["packed"],
        seq_tile=ts, seq_tiles_per_batch=S_pad // ts)
    return out.reshape(B, S_pad, D)[:, :S, :]


def init_params(key, vocab_size, embed_size, d_model, max_len, pad_idx=0):
    k1, k2 = jax.random.split(key, 2)
    emb_f32 = 0.02 * jax.random.normal(k1, (vocab_size, embed_size),
                                       jnp.float32)
    emb_f32 = emb_f32.at[pad_idx].set(0.0)            # padding_idx row = 0
    w_f32 = 0.02 * jax.random.normal(k2, (embed_size, d_model), jnp.float32)
    b = jnp.zeros((d_model,), jnp.float32)
    gamma = jnp.ones((d_model,), jnp.float32)
    beta = jnp.zeros((d_model,), jnp.float32)
    pe_f32 = sinusoidal_pe(max_len, embed_size)
    # Kernel-side constants, cast/packed once (not per call).
    return dict(
        emb_table=emb_f32.astype(jnp.bfloat16),
        pe=pe_f32.astype(jnp.bfloat16),
        w=w_f32.astype(jnp.bfloat16),
        packed=jnp.stack([b, gamma, beta]),            # (3, D) f32
        # f32 copies kept only for the references below.
        emb_table_f32=emb_f32, pe_f32=pe_f32, w_f32=w_f32,
        b=b, gamma=gamma, beta=beta,
    )


# ------------------------------ references -------------------------------- #
def reference_f32(sequence, params):
    """Pure f32 reference (matches the PyTorch module in eval mode)."""
    x = jnp.take(params["emb_table_f32"], sequence, axis=0)
    S = sequence.shape[1]
    x = x + params["pe_f32"][:S][None]
    h = x @ params["w_f32"] + params["b"]
    mean = h.mean(-1, keepdims=True)
    var = ((h - mean) ** 2).mean(-1, keepdims=True)
    y = (h - mean) / jnp.sqrt(var + LN_EPS)
    return y * params["gamma"] + params["beta"]


def reference_mixed(sequence, params):
    """Mirrors the kernel's bf16 streams with f32 accumulation / LN."""
    S = sequence.shape[1]
    x = jnp.take(params["emb_table"], sequence, axis=0)          # bf16
    xs = x + params["pe"][:S][None]                               # bf16 add
    h = jnp.dot(xs.astype(jnp.float32), params["w"].astype(jnp.float32),
                precision=lax.Precision.HIGHEST) + params["b"]
    mean = h.mean(-1, keepdims=True)
    c = h - mean
    var = (c * c).mean(-1, keepdims=True)
    y = c * lax.rsqrt(var + LN_EPS)
    return (y * params["gamma"] + params["beta"]).astype(jnp.bfloat16)


if __name__ == "__main__":
    B, S = 2, 128
    vocab_size, embed_size, d_model, max_len, pad_idx = 1000, 128, 256, 512, 0

    key = jax.random.PRNGKey(0)
    kp, ks = jax.random.split(key)
    params = init_params(kp, vocab_size, embed_size, d_model, max_len, pad_idx)
    sequence = jax.random.randint(ks, (B, S), 0, vocab_size, dtype=jnp.int32)

    out = jax.block_until_ready(transformer_embedding(sequence, params))
    assert out.shape == (B, S, d_model)
    assert out.dtype == jnp.bfloat16

    out_f = out.astype(jnp.float32)
    ref_m = reference_mixed(sequence, params).astype(jnp.float32)
    ref_f = reference_f32(sequence, params)
    err_m = float(jnp.max(jnp.abs(out_f - ref_m)))
    err_f = float(jnp.max(jnp.abs(out_f - ref_f)))
    assert jnp.allclose(out_f, ref_m, atol=2e-2, rtol=2e-2), (
        f"mismatch vs mixed-precision reference (max abs err {err_m})")
    assert jnp.allclose(out_f, ref_f, atol=8e-2, rtol=8e-2), (
        f"mismatch vs f32 reference (max abs err {err_f})")
    print("KERNEL_OK")
</pallas_src>

<mosaic_0001>
module attributes {stable_mosaic.version = 11 : i64} {
  func.func @_embed_kernel(%arg0: i32, %arg1: memref<128x128xbf16, #tpu.memory_space<vmem>>, %arg2: memref<128x128xbf16, #tpu.memory_space<vmem>>, %arg3: memref<128x256xbf16, #tpu.memory_space<vmem>>, %arg4: memref<3x256xf32, #tpu.memory_space<vmem>>, %arg5: memref<128x256xbf16, #tpu.memory_space<vmem>>) attributes {dimension_semantics = [#tpu.dimension_semantics<parallel>], iteration_bounds = array<i64: 2>, scalar_prefetch = 0 : i64, scratch_operands = 0 : i64, tpu.core_type = #tpu.core_type<tc>, window_params = [{transform_indices = @transform_0, window_bounds = array<i64: 128, 128>}, {pipeline_mode = #tpu.pipeline_mode<synchronous>, transform_indices = @transform_1, window_bounds = array<i64: 128, 128>}, {pipeline_mode = #tpu.pipeline_mode<synchronous>, transform_indices = @transform_2, window_bounds = array<i64: 128, 256>}, {pipeline_mode = #tpu.pipeline_mode<synchronous>, transform_indices = @transform_3, window_bounds = array<i64: 3, 256>}, {transform_indices = @transform_4, window_bounds = array<i64: 128, 256>}]} {
    %c0 = arith.constant 0 : index
    %c0_0 = arith.constant 0 : index
    %0 = vector.load %arg1[%c0, %c0_0] : memref<128x128xbf16, #tpu.memory_space<vmem>>, vector<128x128xbf16>
    %c0_1 = arith.constant 0 : index
    %c0_2 = arith.constant 0 : index
    %1 = vector.load %arg2[%c0_1, %c0_2] : memref<128x128xbf16, #tpu.memory_space<vmem>>, vector<128x128xbf16>
    %2 = arith.addf %0, %1 : vector<128x128xbf16>
    %c0_3 = arith.constant 0 : index
    %c0_4 = arith.constant 0 : index
    %3 = vector.load %arg3[%c0_3, %c0_4] : memref<128x256xbf16, #tpu.memory_space<vmem>>, vector<128x256xbf16>
    %cst = arith.constant dense<0.000000e+00> : vector<128x256xf32>
    %4 = tpu.matmul %2, %3, %cst {dimension_numbers = #tpu.dot_dimension_numbers<[1], [0], [0], [1], [0, 0, 1, 1], [], []>} : vector<128x128xbf16>, vector<128x256xbf16>, vector<128x256xf32> -> vector<128x256xf32>
    %c0_5 = arith.constant 0 : index
    %c0_6 = arith.constant 0 : index
    %5 = vector.load %arg4[%c0_5, %c0_6] : memref<3x256xf32, #tpu.memory_space<vmem>>, vector<3x256xf32>
    %6 = vector.extract_strided_slice %5 {offsets = [0, 0], sizes = [1, 256], strides = [1, 1]} : vector<3x256xf32> to vector<1x256xf32>
    %7 = vector.broadcast %6 : vector<1x256xf32> to vector<128x256xf32>
    %8 = arith.addf %4, %7 : vector<128x256xf32>
    %cst_7 = arith.constant dense<0.000000e+00> : vector<128xf32>
    %9 = vector.multi_reduction <add>, %8, %cst_7 [1] : vector<128x256xf32> to vector<128xf32>
    %10 = vector.shape_cast %9 : vector<128xf32> to vector<128x1xf32>
    %cst_8 = arith.constant 2.560000e+02 : f32
    %11 = vector.broadcast %cst_8 : f32 to vector<128x1xf32>
    %12 = arith.divf %10, %11 : vector<128x1xf32>
    %13 = vector.broadcast %12 : vector<128x1xf32> to vector<128x256xf32>
    %14 = arith.subf %8, %13 : vector<128x256xf32>
    %15 = arith.mulf %14, %14 : vector<128x256xf32>
    %cst_9 = arith.constant dense<0.000000e+00> : vector<128xf32>
    %16 = vector.multi_reduction <add>, %15, %cst_9 [1] : vector<128x256xf32> to vector<128xf32>
    %17 = vector.shape_cast %16 : vector<128xf32> to vector<128x1xf32>
    %cst_10 = arith.constant 2.560000e+02 : f32
    %18 = vector.broadcast %cst_10 : f32 to vector<128x1xf32>
    %19 = arith.divf %17, %18 : vector<128x1xf32>
    %cst_11 = arith.constant 9.99999974E-6 : f32
    %20 = vector.broadcast %cst_11 : f32 to vector<128x1xf32>
    %21 = arith.addf %19, %20 : vector<128x1xf32>
    %22 = math.rsqrt %21 : vector<128x1xf32>
    %23 = vector.broadcast %22 : vector<128x1xf32> to vector<128x256xf32>
    %24 = arith.mulf %14, %23 : vector<128x256xf32>
    %25 = vector.extract_strided_slice %5 {offsets = [1, 0], sizes = [1, 256], strides = [1, 1]} : vector<3x256xf32> to vector<1x256xf32>
    %26 = vector.broadcast %25 : vector<1x256xf32> to vector<128x256xf32>
    %27 = arith.mulf %24, %26 : vector<128x256xf32>
    %28 = vector.extract_strided_slice %5 {offsets = [2, 0], sizes = [1, 256], strides = [1, 1]} : vector<3x256xf32> to vector<1x256xf32>
    %29 = vector.broadcast %28 : vector<1x256xf32> to vector<128x256xf32>
    %30 = arith.addf %27, %29 : vector<128x256xf32>
    %31 = arith.truncf %30 : vector<128x256xf32> to vector<128x256xbf16>
    %c0_12 = arith.constant 0 : index
    %c0_13 = arith.constant 0 : index
    %32 = vector.load %arg5[%c0_12, %c0_13] : memref<128x256xbf16, #tpu.memory_space<vmem>>, vector<128x256xbf16>
    tpu.vector_store %arg5[%c0_12, %c0_13], %31 {strides = array<i32>} : memref<128x256xbf16, #tpu.memory_space<vmem>>, vector<128x256xbf16>,
    return
  }
  func.func @transform_0(%arg0: i32) -> (i32, i32) {
    %c0_i32 = arith.constant 0 : i32
    %c0_i32_0 = arith.constant 0 : i32
    return %arg0, %c0_i32 : i32, i32
  }
  func.func @transform_1(%arg0: i32) -> (i32, i32) {
    %c0_i32 = arith.constant 0 : i32
    %c0_i32_0 = arith.constant 0 : i32
    %c0_i32_1 = arith.constant 0 : i32
    return %c0_i32, %c0_i32_0 : i32, i32
  }
  func.func @transform_2(%arg0: i32) -> (i32, i32) {
    %c0_i32 = arith.constant 0 : i32
    %c0_i32_0 = arith.constant 0 : i32
    %c0_i32_1 = arith.constant 0 : i32
    return %c0_i32, %c0_i32_0 : i32, i32
  }
  func.func @transform_3(%arg0: i32) -> (i32, i32) {
    %c0_i32 = arith.constant 0 : i32
    %c0_i32_0 = arith.constant 0 : i32
    %c0_i32_1 = arith.constant 0 : i32
    return %c0_i32, %c0_i32_0 : i32, i32
  }
  func.func @transform_4(%arg0: i32) -> (i32, i32) {
    %c0_i32 = arith.constant 0 : i32
    %c0_i32_0 = arith.constant 0 : i32
    return %arg0, %c0_i32 : i32, i32
  }
}

</mosaic_0001>

<llo_original>
// kernel: tpu_custom_call.1
$region0: #{tpu_custom_call.1}
  #allocation0 [shape = 'u32[]', space=smem, size = 0x4, offset = 0x4, fixed_abs, tag = 'smem constant byte address 0x4 - core index']
  #allocation1 [shape = 'u32[72,128]{1,0:T(1,128)}', space=vmem, size = 0x9000, scoped, tag = 'internal scratch']
  %s0 = inlined_call_operand.hbm [shape: bf16[256,128], index: 0, kind: input, shape index: {}]
  %s1 = inlined_call_operand.hbm [shape: bf16[128,128], index: 1, kind: input, shape index: {}]
  %s2 = inlined_call_operand.hbm [shape: bf16[128,256], index: 2, kind: input, shape index: {}]
  %s3 = inlined_call_operand.hbm [shape: f32[3,256], index: 3, kind: input, shape index: {}]
  %s4 = inlined_call_operand.hbm [shape: bf16[256,256], index: 4, kind: output, shape index: {}]
  %s5 = sld [smem:[#allocation0]]
  $region65: #{tpu_custom_call.1} parent=0
    _
  %s7 = ssub.s32 1, %s5
  %s8 = scalar_select 0, %s7, %s5
  $region1: #{tpu_custom_call.1} parent=0
    #allocation2 [shape = 'u8[65536]{0}', space=vmem, size = 0x10000, scoped, tag = 'input window, operand 0']
    #allocation3 [shape = 's32[2]{0}', space=sflag, size = 0x8, scoped, tag = 'scoped memory for tpu_custom_call.1']
    #allocation4 [shape = 's32[2]{0}', space=sflag, size = 0x8, scoped, tag = 'scoped memory for tpu_custom_call.1']
    #allocation5 [shape = 'u8[32768]{0}', space=vmem, size = 0x8000, scoped, tag = 'input window, operand 1, single buffered']
    #allocation6 [shape = 's32[1]{0}', space=sflag, size = 0x4, scoped, tag = 'scoped memory for tpu_custom_call.1']
    #allocation7 [shape = 'u8[65536]{0}', space=vmem, size = 0x10000, scoped, tag = 'input window, operand 2, single buffered']
    #allocation8 [shape = 'u8[4096]{0}', space=vmem, size = 0x1000, scoped, tag = 'input window, operand 3, single buffered']
    #allocation9 [shape = 's32[1]{0}', space=sflag, size = 0x4, scoped, tag = 'scoped memory for tpu_custom_call.1']
    #allocation10 [shape = 'u8[131072]{0}', space=vmem, size = 0x20000, scoped, tag = 'output window, operand 0']
    %9 = vsyncpa [#allocation3], 0
    %s10 = scalar_lea.sflag [#allocation3], 1
    %11 = vsyncpa %s10, 0
    %12 = vsyncpa [#allocation6], 0
    %13 = vsyncpa [#allocation9], 0
    %14 = vsyncpa [#allocation4], 0
    %s15 = scalar_lea.sflag [#allocation4], 1
    %16 = vsyncpa %s15, 0
    loop: start=0, step=1, limit=4
    $region2: #{tpu_custom_call.1} parent=1 // loop_pre_header
      _
    $region3: #{tpu_custom_call.1} parent=1 // loop_header
      %s18 = sphi 0, %s22
      %p19 = scmp.ge.s32.totalorder %s18, 4
      %s28 = sphi 0, %s30
      %s31 = sphi 0, %s28
      %s32 = sphi 0, %s31
      %s48 = sphi 0, %s32
      %s52 = sphi 0, %s52
      %s54 = sphi 0, %s52
      %s55 = sphi 0, %s54
      %s69 = sphi 0, %s55
      %s73 = sphi 0, %s73
      %s75 = sphi 0, %s73
      %s76 = sphi 0, %s75
      %s90 = sphi 0, %s76
      %s94 = sphi 0, %s94
      %s96 = sphi 0, %s94
      %s97 = sphi 0, %s96
      %s111 = sphi 0, %s97
      %s117 = sphi 0, %s119
      %s120 = sphi 0, %s117
      %s121 = sphi 0, %s120
      %s137 = sphi 0, %s121
    $region4: #{tpu_custom_call.1} parent=1 // loop_header_branch
      %21 = sbr.rel (%p19) target = $region8
    $region5: #{tpu_custom_call.1} parent=1 // loop_body
      %s23 = ssub.s32 %s18, 1
      %s24 = ssub.s32 %s18, 2
      %s25 = sadd.s32 %s18, 1
      %s26 = ssub.s32 %s18, %s25
      %p27 = scmp.eq.s32.totalorder %s26, 0
      %s29 = sadd.s32 %s28, 1
      %s30 = scalar_select %p27, %s28, %s29
      %p33 = pneg %p27
      %p34 = scmp.eq.s32.totalorder %s18, 1
      %p35 = por %p33, %p34
      %p36 = scmp.ne.s32.totalorder %s28, %s31
      %p37 = scmp.eq.s32.totalorder %s18, 0
      %p38 = por %p36, %p37
      %p39 = scmp.ne.s32.totalorder %s28, %s31
      %p40 = scmp.eq.s32.totalorder %s23, 1
      %p41 = por %p39, %p40
      %p42 = scmp.ne.s32.totalorder %s31, %s32
      %p43 = scmp.eq.s32.totalorder %s23, 0
      %p44 = por %p42, %p43
      %p45 = scmp.ne.s32.totalorder %s31, %s32
      %p46 = scmp.eq.s32.totalorder %s24, 1
      %p47 = por %p45, %p46
      %p49 = scmp.ne.s32.totalorder %s32, %s48
      %p50 = scmp.eq.s32.totalorder %s24, 0
      %p51 = por %p49, %p50
      %s53 = sadd.s32 %s52, 1
      %p56 = scmp.eq.s32.totalorder %s18, 1
      %p57 = scmp.ne.s32.totalorder %s52, %s54
      %p58 = scmp.eq.s32.totalorder %s18, 0
      %p59 = por %p57, %p58
      %p60 = scmp.ne.s32.totalorder %s52, %s54
      %p61 = scmp.eq.s32.totalorder %s23, 1
      %p62 = por %p60, %p61
      %p63 = scmp.ne.s32.totalorder %s54, %s55
      %p64 = scmp.eq.s32.totalorder %s23, 0
      %p65 = por %p63, %p64
      %p66 = scmp.ne.s32.totalorder %s54, %s55
      %p67 = scmp.eq.s32.totalorder %s24, 1
      %p68 = por %p66, %p67
      %p70 = scmp.ne.s32.totalorder %s55, %s69
      %p71 = scmp.eq.s32.totalorder %s24, 0
      %p72 = por %p70, %p71
      %s74 = sadd.s32 %s73, 1
      %p77 = scmp.eq.s32.totalorder %s18, 1
      %p78 = scmp.ne.s32.totalorder %s73, %s75
      %p79 = scmp.eq.s32.totalorder %s18, 0
      %p80 = por %p78, %p79
      %p81 = scmp.ne.s32.totalorder %s73, %s75
      %p82 = scmp.eq.s32.totalorder %s23, 1
      %p83 = por %p81, %p82
      %p84 = scmp.ne.s32.totalorder %s75, %s76
      %p85 = scmp.eq.s32.totalorder %s23, 0
      %p86 = por %p84, %p85
      %p87 = scmp.ne.s32.totalorder %s75, %s76
      %p88 = scmp.eq.s32.totalorder %s24, 1
      %p89 = por %p87, %p88
      %p91 = scmp.ne.s32.totalorder %s76, %s90
      %p92 = scmp.eq.s32.totalorder %s24, 0
      %p93 = por %p91, %p92
      %s95 = sadd.s32 %s94, 1
      %p98 = scmp.eq.s32.totalorder %s18, 1
      %p99 = scmp.ne.s32.totalorder %s94, %s96
      %p100 = scmp.eq.s32.totalorder %s18, 0
      %p101 = por %p99, %p100
      %p102 = scmp.ne.s32.totalorder %s94, %s96
      %p103 = scmp.eq.s32.totalorder %s23, 1
      %p104 = por %p102, %p103
      %p105 = scmp.ne.s32.totalorder %s96, %s97
      %p106 = scmp.eq.s32.totalorder %s23, 0
      %p107 = por %p105, %p106
      %p108 = scmp.ne.s32.totalorder %s96, %s97
      %p109 = scmp.eq.s32.totalorder %s24, 1
      %p110 = por %p108, %p109
      %p112 = scmp.ne.s32.totalorder %s97, %s111
      %p113 = scmp.eq.s32.totalorder %s24, 0
      %p114 = por %p112, %p113
      %s115 = ssub.s32 %s18, %s25
      %p116 = scmp.eq.s32.totalorder %s115, 0
      %s118 = sadd.s32 %s117, 1
      %s119 = scalar_select %p116, %s117, %s118
      %p122 = pneg %p116
      %p123 = scmp.eq.s32.totalorder %s18, 1
      %p124 = por %p122, %p123
      %p125 = scmp.ne.s32.totalorder %s117, %s120
      %p126 = scmp.eq.s32.totalorder %s18, 0
      %p127 = por %p125, %p126
      %p128 = scmp.ne.s32.totalorder %s117, %s120
      %p129 = scmp.eq.s32.totalorder %s23, 1
      %p130 = por %p128, %p129
      %p131 = scmp.ne.s32.totalorder %s120, %s121
      %p132 = scmp.eq.s32.totalorder %s23, 0
      %p133 = por %p131, %p132
      %p134 = scmp.ne.s32.totalorder %s120, %s121
      %p135 = scmp.eq.s32.totalorder %s24, 1
      %p136 = por %p134, %p135
      %p138 = scmp.ne.s32.totalorder %s121, %s137
      %p139 = scmp.eq.s32.totalorder %s24, 0
      %p140 = por %p138, %p139
      %p141 = scmp.le.s32.totalorder 1, %s18
      %p142 = scmp.lt.s32.totalorder %s18, 3
      %p143 = pnand %p141, %p142
      %p144 = pneg %p143
      // Predicated region
      $region9: #{tpu_custom_call.1} parent=5 // pred_check
        _
      $region10: #{tpu_custom_call.1} parent=5 // pred_check_branch
        %146 = sbr.rel (%p143) target = $region12
      $region11: #{tpu_custom_call.1} parent=5 // pred_region
        %s147 = ssub.s32 %s18, 1
        // Predicated region
        $region13: #{tpu_custom_call.1} parent=11 // pred_check
          %p148 = pneg %p65
        $region14: #{tpu_custom_call.1} parent=11 // pred_check_branch
          %150 = sbr.rel (%p148) target = $region16
        $region15: #{tpu_custom_call.1} parent=11 // pred_region
          %152 = vsyncadd [#allocation6], 0
          %s153 = sshll.u32 %s1, 4
          %s154 = int_to_ptr.hbm [resolvable:$true] %s153
          %s155 = sshll.u32 [#allocation5], 4
          %s156 = int_to_ptr.vmem [resolvable:$true] %s155
          %161 = dma.hbm_to_vmem [thread:$0]  %s154, 1024, %s156, [#allocation6], 64, 64, 4
        $region16: #{tpu_custom_call.1} parent=11 // pred_fallthru
          _
        // Predicated region
        $region17: #{tpu_custom_call.1} parent=11 // pred_check
          %p162 = pneg %p86
        $region18: #{tpu_custom_call.1} parent=11 // pred_check_branch
          %164 = sbr.rel (%p162) target = $region20
        $region19: #{tpu_custom_call.1} parent=11 // pred_region
          %166 = vsyncadd [#allocation6], 0
          %s167 = sshll.u32 %s2, 4
          %s168 = int_to_ptr.hbm [resolvable:$true] %s167
          %s169 = sshll.u32 [#allocation7], 4
          %s170 = int_to_ptr.vmem [resolvable:$true] %s169
          %175 = dma.hbm_to_vmem [thread:$0]  %s168, 2048, %s170, [#allocation6], 128, 128, 8
        $region20: #{tpu_custom_call.1} parent=11 // pred_fallthru
          _
        // Predicated region
        $region21: #{tpu_custom_call.1} parent=11 // pred_check
          %p176 = pneg %p107
        $region22: #{tpu_custom_call.1} parent=11 // pred_check_branch
          %178 = sbr.rel (%p176) target = $region24
        $region23: #{tpu_custom_call.1} parent=11 // pred_region
          %180 = vsyncadd [#allocation9], 0
          %s182 = sshll.u32 %s3, 4
          %s183 = int_to_ptr.hbm [resolvable:$true] %s182
          %s184 = sshll.u32 [#allocation8], 4
          %s185 = int_to_ptr.vmem [resolvable:$true] %s184
          %187 = dma.hbm_to_vmem [thread:$0]  %s183, 128, %s185, [#allocation9]
        $region24: #{tpu_custom_call.1} parent=11 // pred_fallthru
          _
      $region12: #{tpu_custom_call.1} parent=5 // pred_fallthru
        _
      %p188 = scmp.lt.s32.totalorder %s18, 2
      // Predicated region
      $region25: #{tpu_custom_call.1} parent=5 // pred_check
        %p189 = pneg %p188
      $region26: #{tpu_custom_call.1} parent=5 // pred_check_branch
        %191 = sbr.rel (%p189) target = $region28
      $region27: #{tpu_custom_call.1} parent=5 // pred_region
        // Predicated region
        $region29: #{tpu_custom_call.1} parent=27 // pred_check
          %p192 = pneg %p38
        $region30: #{tpu_custom_call.1} parent=27 // pred_check_branch
          %194 = sbr.rel (%p192) target = $region32
        $region31: #{tpu_custom_call.1} parent=27 // pred_region
          %s195 = sand.u32 %s28, 1
          %s196 = scalar_lea.sflag [#allocation3], %s195
          %s197 = sand.u32 %s28, 1
          %s198 = smul.addr %s197, 64
          %s199 = scalar_lea.vmem [#allocation2], %s198
          %s200 = smul.u32 16, %s18
          %202 = vsyncadd %s196, 0
          %s203 = smul.addr %s200, 4
          %s204 = scalar_lea.hbm %s0, %s203
          %s205 = sshll.u32 %s204, 4
          %s206 = int_to_ptr.hbm [resolvable:$true] %s205
          %s207 = sshll.u32 %s199, 4
          %s208 = int_to_ptr.vmem [resolvable:$true] %s207
          %213 = dma.hbm_to_vmem [thread:$0]  %s206, 1024, %s208, %s196, 64, 64, 4
        $region32: #{tpu_custom_call.1} parent=27 // pred_fallthru
          _
      $region28: #{tpu_custom_call.1} parent=5 // pred_fallthru
        _
      %p214 = scmp.le.s32.totalorder 1, %s18
      %p215 = scmp.lt.s32.totalorder %s18, 3
      %p216 = pnand %p214, %p215
      %p217 = pneg %p216
      // Predicated region
      $region33: #{tpu_custom_call.1} parent=5 // pred_check
        _
      $region34: #{tpu_custom_call.1} parent=5 // pred_check_branch
        %219 = sbr.rel (%p216) target = $region36
      $region35: #{tpu_custom_call.1} parent=5 // pred_region
        %s220 = ssub.s32 %s18, 1
        %s221 = sand.u32 %s31, 1
        %s222 = scalar_lea.sflag [#allocation3], %s221
        %s223 = sand.u32 %s31, 1
        %s224 = smul.addr %s223, 64
        %s225 = scalar_lea.vmem [#allocation2], %s224
        // Predicated region
        $region37: #{tpu_custom_call.1} parent=35 // pred_check
          %p226 = pneg %p44
        $region38: #{tpu_custom_call.1} parent=35 // pred_check_branch
          %228 = sbr.rel (%p226) target = $region40
        $region39: #{tpu_custom_call.1} parent=35 // pred_region
          %230 = dma.done %s222, 1024
        $region40: #{tpu_custom_call.1} parent=35 // pred_fallthru
          _
        // Predicated region
        $region41: #{tpu_custom_call.1} parent=35 // pred_check
          %p231 = pneg %p65
        $region42: #{tpu_custom_call.1} parent=35 // pred_check_branch
          %233 = sbr.rel (%p231) target = $region44
        $region43: #{tpu_custom_call.1} parent=35 // pred_region
          %235 = dma.done [#allocation6], 1024
        $region44: #{tpu_custom_call.1} parent=35 // pred_fallthru
          _
        // Predicated region
        $region45: #{tpu_custom_call.1} parent=35 // pred_check
          %p236 = pneg %p86
        $region46: #{tpu_custom_call.1} parent=35 // pred_check_branch
          %238 = sbr.rel (%p236) target = $region48
        $region47: #{tpu_custom_call.1} parent=35 // pred_region
          %240 = dma.done [#allocation6], 2048
        $region48: #{tpu_custom_call.1} parent=35 // pred_fallthru
          _
        // Predicated region
        $region49: #{tpu_custom_call.1} parent=35 // pred_check
          %p241 = pneg %p107
        $region50: #{tpu_custom_call.1} parent=35 // pred_check_branch
          %243 = sbr.rel (%p241) target = $region52
        $region51: #{tpu_custom_call.1} parent=35 // pred_region
          %245 = dma.done [#allocation9], 128
        $region52: #{tpu_custom_call.1} parent=35 // pred_fallthru
          _
        %s246 = sand.u32 %s31, 1
        %s247 = scalar_lea.sflag [#allocation3], %s246
        %s248 = sand.u32 %s31, 1
        %s249 = smul.addr %s248, 64
        %s250 = scalar_lea.vmem [#allocation2], %s249
        %p251 = pneg %p44
        %p252 = pneg %p41
        %p253 = pneg %p65
        %p254 = pneg %p62
        %p255 = pneg %p86
        %p256 = pneg %p83
        %p257 = pneg %p107
        %p258 = pneg %p104
        %p259 = pneg %p133
        %p260 = pneg %p130
        %s261 = sand.u32 %s120, 1
        %s262 = scalar_lea.sflag [#allocation4], %s261
        %s263 = sand.u32 %s120, 1
        %s264 = smul.addr %s263, 128
        %s265 = scalar_lea.vmem [#allocation10], %s264
        %s266 = smul.u32 16, %s23
        %s267 = smul.u32 16, %s23
        %v268 = vld [vmem:[%s225] sm:$0xf]
        %v269 = vld [vmem:[%s225 + $0x4] sm:$0xf]
        %v270 = vld [vmem:[%s225 + $0x8] sm:$0xf]
        %v271 = vld [vmem:[%s225 + $0xc] sm:$0xf]
        %v272 = vld [vmem:[%s225 + $0x10] sm:$0xf]
        %v273 = vld [vmem:[%s225 + $0x14] sm:$0xf]
        %v274 = vld [vmem:[%s225 + $0x18] sm:$0xf]
        %v275 = vld [vmem:[%s225 + $0x1c] sm:$0xf]
        %v276 = vld [vmem:[%s225 + $0x20] sm:$0xf]
        %v277 = vld [vmem:[%s225 + $0x24] sm:$0xf]
        %v278 = vld [vmem:[%s225 + $0x28] sm:$0xf]
        %v279 = vld [vmem:[%s225 + $0x2c] sm:$0xf]
        %v280 = vld [vmem:[%s225 + $0x30] sm:$0xf]
        %v281 = vld [vmem:[%s225 + $0x34] sm:$0xf]
        %v282 = vld [vmem:[%s225 + $0x38] sm:$0xf]
        %v283 = vld [vmem:[%s225 + $0x3c] sm:$0xf]
        %v284 = vld [vmem:[#allocation5] sm:$0xf]
        %v285 = vld [vmem:[#allocation5 + $0x4] sm:$0xf]
        %v286 = vld [vmem:[#allocation5 + $0x8] sm:$0xf]
        %v287 = vld [vmem:[#allocation5 + $0xc] sm:$0xf]
        %v288 = vld [vmem:[#allocation5 + $0x10] sm:$0xf]
        %v289 = vld [vmem:[#allocation5 + $0x14] sm:$0xf]
        %v290 = vld [vmem:[#allocation5 + $0x18] sm:$0xf]
        %v291 = vld [vmem:[#allocation5 + $0x1c] sm:$0xf]
        %v292 = vld [vmem:[#allocation5 + $0x20] sm:$0xf]
        %v293 = vld [vmem:[#allocation5 + $0x24] sm:$0xf]
        %v294 = vld [vmem:[#allocation5 + $0x28] sm:$0xf]
        %v295 = vld [vmem:[#allocation5 + $0x2c] sm:$0xf]
        %v296 = vld [vmem:[#allocation5 + $0x30] sm:$0xf]
        %v297 = vld [vmem:[#allocation5 + $0x34] sm:$0xf]
        %v298 = vld [vmem:[#allocation5 + $0x38] sm:$0xf]
        %v299 = vld [vmem:[#allocation5 + $0x3c] sm:$0xf]
        %v300 = vunpack.c.l.bf16 %v268
        %v301 = vunpack.c.l.bf16 %v269
        %v302 = vunpack.c.l.bf16 %v270
        %v303 = vunpack.c.l.bf16 %v271
        %v304 = vunpack.c.l.bf16 %v272
        %v305 = vunpack.c.l.bf16 %v273
        %v306 = vunpack.c.l.bf16 %v274
        %v307 = vunpack.c.l.bf16 %v275
        %v308 = vunpack.c.l.bf16 %v276
        %v309 = vunpack.c.l.bf16 %v277
        %v310 = vunpack.c.l.bf16 %v278
        %v311 = vunpack.c.l.bf16 %v279
        %v312 = vunpack.c.l.bf16 %v280
        %v313 = vunpack.c.l.bf16 %v281
        %v314 = vunpack.c.l.bf16 %v282
        %v315 = vunpack.c.l.bf16 %v283
        %v316 = vunpack.c.l.bf16 %v284
        %v317 = vunpack.c.l.bf16 %v285
        %v318 = vunpack.c.l.bf16 %v286
        %v319 = vunpack.c.l.bf16 %v287
        %v320 = vunpack.c.l.bf16 %v288
        %v321 = vunpack.c.l.bf16 %v289
        %v322 = vunpack.c.l.bf16 %v290
        %v323 = vunpack.c.l.bf16 %v291
        %v324 = vunpack.c.l.bf16 %v292
        %v325 = vunpack.c.l.bf16 %v293
        %v326 = vunpack.c.l.bf16 %v294
        %v327 = vunpack.c.l.bf16 %v295
        %v328 = vunpack.c.l.bf16 %v296
        %v329 = vunpack.c.l.bf16 %v297
        %v330 = vunpack.c.l.bf16 %v298
        %v331 = vunpack.c.l.bf16 %v299
        %v332 = vadd.f32 %v300, %v316
        %v333 = vadd.f32 %v301, %v317
        %v334 = vadd.f32 %v302, %v318
        %v335 = vadd.f32 %v303, %v319
        %v336 = vadd.f32 %v304, %v320
        %v337 = vadd.f32 %v305, %v321
        %v338 = vadd.f32 %v306, %v322
        %v339 = vadd.f32 %v307, %v323
        %v340 = vadd.f32 %v308, %v324
        %v341 = vadd.f32 %v309, %v325
        %v342 = vadd.f32 %v310, %v326
        %v343 = vadd.f32 %v311, %v327
        %v344 = vadd.f32 %v312, %v328
        %v345 = vadd.f32 %v313, %v329
        %v346 = vadd.f32 %v314, %v330
        %v347 = vadd.f32 %v315, %v331
        %v348 = vpack.c.bf16 %v333, %v332
        %v349 = vpack.c.bf16 %v335, %v334
        %v350 = vpack.c.bf16 %v337, %v336
        %v351 = vpack.c.bf16 %v339, %v338
        %v352 = vpack.c.bf16 %v341, %v340
        %v353 = vpack.c.bf16 %v343, %v342
        %v354 = vpack.c.bf16 %v345, %v344
        %v355 = vpack.c.bf16 %v347, %v346
        %v356 = vld [vmem:[#allocation7] sm:$0xff]
        %v357 = vld [vmem:[#allocation7 + $0x8] sm:$0xff]
        %v358 = vld [vmem:[#allocation7 + $0x10] sm:$0xff]
        %v359 = vld [vmem:[#allocation7 + $0x18] sm:$0xff]
        %v360 = vld [vmem:[#allocation7 + $0x20] sm:$0xff]
        %v361 = vld [vmem:[#allocation7 + $0x28] sm:$0xff]
        %v362 = vld [vmem:[#allocation7 + $0x30] sm:$0xff]
        %v363 = vld [vmem:[#allocation7 + $0x38] sm:$0xff]
        %v364 = vld [vmem:[#allocation7 + $0x40] sm:$0xff]
        %v365 = vld [vmem:[#allocation7 + $0x48] sm:$0xff]
        %v366 = vld [vmem:[#allocation7 + $0x50] sm:$0xff]
        %v367 = vld [vmem:[#allocation7 + $0x58] sm:$0xff]
        %v368 = vld [vmem:[#allocation7 + $0x60] sm:$0xff]
        %v369 = vld [vmem:[#allocation7 + $0x68] sm:$0xff]
        %v370 = vld [vmem:[#allocation7 + $0x70] sm:$0xff]
        %v371 = vld [vmem:[#allocation7 + $0x78] sm:$0xff]
        %v372 = vld [vmem:[#allocation8] sm:$0x77]
        %v374 = vperm.slane %v372, 0
        %v375 = vperm.slane %v372, 4
        %v378 = vperm.slane %v374, 0
        %v379 = vperm.slane %v375, 0
        %v396 = vunpack.c.l.b16 %v356
        %v397 = vunpack.c.h.b16 %v356
        %v398 = vunpack.c.l.b16 %v357
        %v399 = vunpack.c.h.b16 %v357
        %v400 = vunpack.c.l.b16 %v358
        %v401 = vunpack.c.h.b16 %v358
        %v402 = vunpack.c.l.b16 %v359
        %v403 = vunpack.c.h.b16 %v359
        %v404 = vunpack.c.l.b16 %v360
        %v405 = vunpack.c.h.b16 %v360
        %v406 = vunpack.c.l.b16 %v361
        %v407 = vunpack.c.h.b16 %v361
        %v408 = vunpack.c.l.b16 %v362
        %v409 = vunpack.c.h.b16 %v362
        %v410 = vunpack.c.l.b16 %v363
        %v411 = vunpack.c.h.b16 %v363
        %v412 = vunpack.c.l.b16 %v364
        %v413 = vunpack.c.h.b16 %v364
        %v414 = vunpack.c.l.b16 %v365
        %v415 = vunpack.c.h.b16 %v365
        %v416 = vunpack.c.l.b16 %v366
        %v417 = vunpack.c.h.b16 %v366
        %v418 = vunpack.c.l.b16 %v367
        %v419 = vunpack.c.h.b16 %v367
        %v420 = vunpack.c.l.b16 %v368
        %v421 = vunpack.c.h.b16 %v368
        %v422 = vunpack.c.l.b16 %v369
        %v423 = vunpack.c.h.b16 %v369
        %v424 = vunpack.c.l.b16 %v370
        %v425 = vunpack.c.h.b16 %v370
        %v426 = vunpack.c.l.b16 %v371
        %v427 = vunpack.c.h.b16 %v371
        %v428 = vpack.c.b16 %v398, %v396
        %v429 = vpack.c.b16 %v399, %v397
        %v430 = vpack.c.b16 %v402, %v400
        %v431 = vpack.c.b16 %v403, %v401
        %v432 = vpack.c.b16 %v406, %v404
        %v433 = vpack.c.b16 %v407, %v405
        %v434 = vpack.c.b16 %v410, %v408
        %v435 = vpack.c.b16 %v411, %v409
        %v436 = vpack.c.b16 %v414, %v412
        %v437 = vpack.c.b16 %v415, %v413
        %v438 = vpack.c.b16 %v418, %v416
        %v439 = vpack.c.b16 %v419, %v417
        %v440 = vpack.c.b16 %v422, %v420
        %v441 = vpack.c.b16 %v423, %v421
        %v442 = vpack.c.b16 %v426, %v424
        %v443 = vpack.c.b16 %v427, %v425
        %460 = vmatpush.bf16.msra.mxu0 %v442
        %461 = vmatpush.bf16.msra.mxu0 %v440
        %462 = vmatpush.bf16.msra.mxu0 %v438
        %463 = vmatpush.bf16.msra.mxu0 %v436
        %464 = vmatpush.bf16.msra.mxu0 %v434
        %465 = vmatpush.bf16.msra.mxu0 %v432
        %466 = vmatpush.bf16.msra.mxu0 %v430
        %467 = vmatpush.bf16.msra.mxu0 %v428
        %468 = vmatmul.bf16.gmra.mxu0 %v348
        %v469 = vpop.f32.mrf.mxu0
        %v470 = vadd.f32 %v378, %v469
        %v471 = vpop.f32.mrf.mxu0
        %v472 = vadd.f32 %v378, %v471
        %473 = vmatmul.bf16.gmra.mxu0 %v349
        %v474 = vpop.f32.mrf.mxu0
        %v475 = vadd.f32 %v378, %v474
        %v476 = vpop.f32.mrf.mxu0
        %v477 = vadd.f32 %v378, %v476
        %478 = vmatmul.bf16.gmra.mxu0 %v350
        %v479 = vpop.f32.mrf.mxu0
        %v480 = vadd.f32 %v378, %v479
        %v481 = vpop.f32.mrf.mxu0
        %v482 = vadd.f32 %v378, %v481
        %483 = vmatmul.bf16.gmra.mxu0 %v351
        %v484 = vpop.f32.mrf.mxu0
        %v485 = vadd.f32 %v378, %v484
        %v486 = vpop.f32.mrf.mxu0
        %v487 = vadd.f32 %v378, %v486
        %488 = vmatmul.bf16.gmra.mxu0 %v352
        %v489 = vpop.f32.mrf.mxu0
        %v490 = vadd.f32 %v378, %v489
        %v491 = vpop.f32.mrf.mxu0
        %v492 = vadd.f32 %v378, %v491
        %493 = vmatmul.bf16.gmra.mxu0 %v353
        %v494 = vpop.f32.mrf.mxu0
        %v495 = vadd.f32 %v378, %v494
        %v496 = vpop.f32.mrf.mxu0
        %v497 = vadd.f32 %v378, %v496
        %498 = vmatmul.bf16.gmra.mxu0 %v354
        %v499 = vpop.f32.mrf.mxu0
        %v500 = vadd.f32 %v378, %v499
        %v501 = vpop.f32.mrf.mxu0
        %v502 = vadd.f32 %v378, %v501
        %503 = vmatmul.bf16.gmra.mxu0 %v355
        %v504 = vpop.f32.mrf.mxu0
        %v505 = vadd.f32 %v378, %v504
        %v506 = vpop.f32.mrf.mxu0
        %v507 = vadd.f32 %v378, %v506
        %508 = vdwg.mxu0
        %509 = vmatpush.bf16.msra.mxu0 %v443
        %510 = vmatpush.bf16.msra.mxu0 %v441
        %511 = vmatpush.bf16.msra.mxu0 %v439
        %512 = vmatpush.bf16.msra.mxu0 %v437
        %513 = vmatpush.bf16.msra.mxu0 %v435
        %514 = vmatpush.bf16.msra.mxu0 %v433
        %515 = vmatpush.bf16.msra.mxu0 %v431
        %516 = vmatpush.bf16.msra.mxu0 %v429
        %517 = vmatmul.bf16.gmra.mxu0 %v348
        %v518 = vpop.f32.mrf.mxu0
        %v519 = vadd.f32 %v379, %v518
        %v520 = vpop.f32.mrf.mxu0
        %v521 = vadd.f32 %v379, %v520
        %522 = vmatmul.bf16.gmra.mxu0 %v349
        %v523 = vpop.f32.mrf.mxu0
        %v524 = vadd.f32 %v379, %v523
        %v525 = vpop.f32.mrf.mxu0
        %v526 = vadd.f32 %v379, %v525
        %527 = vmatmul.bf16.gmra.mxu0 %v350
        %v528 = vpop.f32.mrf.mxu0
        %v529 = vadd.f32 %v379, %v528
        %v530 = vpop.f32.mrf.mxu0
        %v531 = vadd.f32 %v379, %v530
        %532 = vmatmul.bf16.gmra.mxu0 %v351
        %v533 = vpop.f32.mrf.mxu0
        %v534 = vadd.f32 %v379, %v533
        %v535 = vpop.f32.mrf.mxu0
        %v536 = vadd.f32 %v379, %v535
        %537 = vmatmul.bf16.gmra.mxu0 %v352
        %v538 = vpop.f32.mrf.mxu0
        %v539 = vadd.f32 %v379, %v538
        %v540 = vpop.f32.mrf.mxu0
        %v541 = vadd.f32 %v379, %v540
        %542 = vmatmul.bf16.gmra.mxu0 %v353
        %v543 = vpop.f32.mrf.mxu0
        %v544 = vadd.f32 %v379, %v543
        %v545 = vpop.f32.mrf.mxu0
        %v546 = vadd.f32 %v379, %v545
        %547 = vmatmul.bf16.gmra.mxu0 %v354
        %v548 = vpop.f32.mrf.mxu0
        %v549 = vadd.f32 %v379, %v548
        %v550 = vpop.f32.mrf.mxu0
        %v551 = vadd.f32 %v379, %v550
        %552 = vmatmul.bf16.gmra.mxu0 %v355
        %v553 = vpop.f32.mrf.mxu0
        %v554 = vadd.f32 %v379, %v553
        %v555 = vpop.f32.mrf.mxu0
        %v556 = vadd.f32 %v379, %v555
        %557 = vdwg.mxu0
        %v558 = vadd.f32 %v470, %v519
        %559 = vadd.xlane.f32.xlu0 %v558
        %v560 = vpop.xlane.xlu0 %559
        %v561 = vadd.f32 %v472, %v521
        %562 = vadd.xlane.f32.xlu0 %v561
        %v563 = vpop.xlane.xlu0 %562
        %v564 = vadd.f32 %v475, %v524
        %565 = vadd.xlane.f32.xlu0 %v564
        %v566 = vpop.xlane.xlu0 %565
        %v567 = vadd.f32 %v477, %v526
        %568 = vadd.xlane.f32.xlu0 %v567
        %v569 = vpop.xlane.xlu0 %568
        %v570 = vadd.f32 %v480, %v529
        %571 = vadd.xlane.f32.xlu0 %v570
        %v572 = vpop.xlane.xlu0 %571
        %v573 = vadd.f32 %v482, %v531
        %574 = vadd.xlane.f32.xlu0 %v573
        %v575 = vpop.xlane.xlu0 %574
        %v576 = vadd.f32 %v485, %v534
        %577 = vadd.xlane.f32.xlu0 %v576
        %v578 = vpop.xlane.xlu0 %577
        %v579 = vadd.f32 %v487, %v536
        %580 = vadd.xlane.f32.xlu0 %v579
        %v581 = vpop.xlane.xlu0 %580
        %v582 = vadd.f32 %v490, %v539
        %583 = vadd.xlane.f32.xlu0 %v582
        %v584 = vpop.xlane.xlu0 %583
        %v585 = vadd.f32 %v492, %v541
        %586 = vadd.xlane.f32.xlu0 %v585
        %v587 = vpop.xlane.xlu0 %586
        %v588 = vadd.f32 %v495, %v544
        %589 = vadd.xlane.f32.xlu0 %v588
        %v590 = vpop.xlane.xlu0 %589
        %v591 = vadd.f32 %v497, %v546
        %592 = vadd.xlane.f32.xlu0 %v591
        %v593 = vpop.xlane.xlu0 %592
        %v594 = vadd.f32 %v500, %v549
        %595 = vadd.xlane.f32.xlu0 %v594
        %v596 = vpop.xlane.xlu0 %595
        %v597 = vadd.f32 %v502, %v551
        %598 = vadd.xlane.f32.xlu0 %v597
        %v599 = vpop.xlane.xlu0 %598
        %v600 = vadd.f32 %v505, %v554
        %601 = vadd.xlane.f32.xlu0 %v600
        %v602 = vpop.xlane.xlu0 %601
        %v603 = vadd.f32 %v507, %v556
        %604 = vadd.xlane.f32.xlu0 %v603
        %v605 = vpop.xlane.xlu0 %604
        %v606 = vrcp.pop 256.0
        %v607 = vmul.f32 256.0, %v606
        %v608 = vsub.f32 1.0, %v607
        %v609 = vmul.f32 %v606, %v608
        %v610 = vadd.f32 %v606, %v609
        %vm611 = vweird.f32 %v606
        %v612 = vsel %vm611, %v606, %v610
        %v613 = vmul.f32 %v560, %v612
        %v614 = vmul.f32 %v563, %v612
        %v615 = vmul.f32 %v566, %v612
        %v616 = vmul.f32 %v569, %v612
        %v617 = vmul.f32 %v572, %v612
        %v618 = vmul.f32 %v575, %v612
        %v619 = vmul.f32 %v578, %v612
        %v620 = vmul.f32 %v581, %v612
        %v621 = vmul.f32 %v584, %v612
        %v622 = vmul.f32 %v587, %v612
        %v623 = vmul.f32 %v590, %v612
        %v624 = vmul.f32 %v593, %v612
        %v625 = vmul.f32 %v596, %v612
        %v626 = vmul.f32 %v599, %v612
        %v627 = vmul.f32 %v602, %v612
        %v628 = vmul.f32 %v605, %v612
        %v629 = vsub.f32 %v470, %v613
        %v630 = vsub.f32 %v519, %v613
        %v631 = vsub.f32 %v472, %v614
        %v632 = vsub.f32 %v521, %v614
        %v633 = vsub.f32 %v475, %v615
        %v634 = vsub.f32 %v524, %v615
        %v635 = vsub.f32 %v477, %v616
        %v636 = vsub.f32 %v526, %v616
        %v637 = vsub.f32 %v480, %v617
        %v638 = vsub.f32 %v529, %v617
        %v639 = vsub.f32 %v482, %v618
        %v640 = vsub.f32 %v531, %v618
        %v641 = vsub.f32 %v485, %v619
        %v642 = vsub.f32 %v534, %v619
        %v643 = vsub.f32 %v487, %v620
        %v644 = vsub.f32 %v536, %v620
        %v645 = vsub.f32 %v490, %v621
        %v646 = vsub.f32 %v539, %v621
        %v647 = vsub.f32 %v492, %v622
        %v648 = vsub.f32 %v541, %v622
        %v649 = vsub.f32 %v495, %v623
        %v650 = vsub.f32 %v544, %v623
        %v651 = vsub.f32 %v497, %v624
        %v652 = vsub.f32 %v546, %v624
        %v653 = vsub.f32 %v500, %v625
        %v654 = vsub.f32 %v549, %v625
        %v655 = vsub.f32 %v502, %v626
        %v656 = vsub.f32 %v551, %v626
        %v657 = vsub.f32 %v505, %v627
        %v658 = vsub.f32 %v554, %v627
        %v659 = vsub.f32 %v507, %v628
        %v660 = vsub.f32 %v556, %v628
        %v661 = vmul.f32 %v629, %v629
        %v662 = vmul.f32 %v630, %v630
        %v663 = vmul.f32 %v631, %v631
        %v664 = vmul.f32 %v632, %v632
        %v665 = vmul.f32 %v633, %v633
        %v666 = vmul.f32 %v634, %v634
        %v667 = vmul.f32 %v635, %v635
        %v668 = vmul.f32 %v636, %v636
        %v669 = vmul.f32 %v637, %v637
        %v670 = vmul.f32 %v638, %v638
        %v671 = vmul.f32 %v639, %v639
        %v672 = vmul.f32 %v640, %v640
        %v673 = vmul.f32 %v641, %v641
        %v674 = vmul.f32 %v642, %v642
        %v675 = vmul.f32 %v643, %v643
        %v676 = vmul.f32 %v644, %v644
        %v677 = vmul.f32 %v645, %v645
        %v678 = vmul.f32 %v646, %v646
        %v679 = vmul.f32 %v647, %v647
        %v680 = vmul.f32 %v648, %v648
        %v681 = vmul.f32 %v649, %v649
        %v682 = vmul.f32 %v650, %v650
        %v683 = vmul.f32 %v651, %v651
        %v684 = vmul.f32 %v652, %v652
        %v685 = vmul.f32 %v653, %v653
        %v686 = vmul.f32 %v654, %v654
        %v687 = vmul.f32 %v655, %v655
        %v688 = vmul.f32 %v656, %v656
        %v689 = vmul.f32 %v657, %v657
        %v690 = vmul.f32 %v658, %v658
        %v691 = vmul.f32 %v659, %v659
        %v692 = vmul.f32 %v660, %v660
        %v693 = vadd.f32 %v661, %v662
        %694 = vadd.xlane.f32.xlu0 %v693
        %v695 = vpop.xlane.xlu0 %694
        %v696 = vadd.f32 %v663, %v664
        %697 = vadd.xlane.f32.xlu0 %v696
        %v698 = vpop.xlane.xlu0 %697
        %v699 = vadd.f32 %v665, %v666
        %700 = vadd.xlane.f32.xlu0 %v699
        %v701 = vpop.xlane.xlu0 %700
        %v702 = vadd.f32 %v667, %v668
        %703 = vadd.xlane.f32.xlu0 %v702
        %v704 = vpop.xlane.xlu0 %703
        %v705 = vadd.f32 %v669, %v670
        %706 = vadd.xlane.f32.xlu0 %v705
        %v707 = vpop.xlane.xlu0 %706
        %v708 = vadd.f32 %v671, %v672
        %709 = vadd.xlane.f32.xlu0 %v708
        %v710 = vpop.xlane.xlu0 %709
        %v711 = vadd.f32 %v673, %v674
        %712 = vadd.xlane.f32.xlu0 %v711
        %v713 = vpop.xlane.xlu0 %712
        %v714 = vadd.f32 %v675, %v676
        %715 = vadd.xlane.f32.xlu0 %v714
        %v716 = vpop.xlane.xlu0 %715
        %v717 = vadd.f32 %v677, %v678
        %718 = vadd.xlane.f32.xlu0 %v717
        %v719 = vpop.xlane.xlu0 %718
        %v720 = vadd.f32 %v679, %v680
        %721 = vadd.xlane.f32.xlu0 %v720
        %v722 = vpop.xlane.xlu0 %721
        %v723 = vadd.f32 %v681, %v682
        %724 = vadd.xlane.f32.xlu0 %v723
        %v725 = vpop.xlane.xlu0 %724
        %v726 = vadd.f32 %v683, %v684
        %727 = vadd.xlane.f32.xlu0 %v726
        %v728 = vpop.xlane.xlu0 %727
        %v729 = vadd.f32 %v685, %v686
        %730 = vadd.xlane.f32.xlu0 %v729
        %v731 = vpop.xlane.xlu0 %730
        %v732 = vadd.f32 %v687, %v688
        %733 = vadd.xlane.f32.xlu0 %v732
        %v734 = vpop.xlane.xlu0 %733
        %v735 = vadd.f32 %v689, %v690
        %736 = vadd.xlane.f32.xlu0 %v735
        %v737 = vpop.xlane.xlu0 %736
        %v738 = vadd.f32 %v691, %v692
        %739 = vadd.xlane.f32.xlu0 %v738
        %v740 = vpop.xlane.xlu0 %739
        %v741 = vmul.f32 %v695, %v612
        %v742 = vmul.f32 %v698, %v612
        %v743 = vmul.f32 %v701, %v612
        %v744 = vmul.f32 %v704, %v612
        %v745 = vmul.f32 %v707, %v612
        %v746 = vmul.f32 %v710, %v612
        %v747 = vmul.f32 %v713, %v612
        %v748 = vmul.f32 %v716, %v612
        %v749 = vmul.f32 %v719, %v612
        %v750 = vmul.f32 %v722, %v612
        %v751 = vmul.f32 %v725, %v612
        %v752 = vmul.f32 %v728, %v612
        %v753 = vmul.f32 %v731, %v612
        %v754 = vmul.f32 %v734, %v612
        %v755 = vmul.f32 %v737, %v612
        %v756 = vmul.f32 %v740, %v612
        %v757 = vadd.f32 %v741, 1e-05
        %v758 = vadd.f32 %v742, 1e-05
        %v759 = vadd.f32 %v743, 1e-05
        %v760 = vadd.f32 %v744, 1e-05
        %v761 = vadd.f32 %v745, 1e-05
        %v762 = vadd.f32 %v746, 1e-05
        %v763 = vadd.f32 %v747, 1e-05
        %v764 = vadd.f32 %v748, 1e-05
        %v765 = vadd.f32 %v749, 1e-05
        %v766 = vadd.f32 %v750, 1e-05
        %v767 = vadd.f32 %v751, 1e-05
        %v768 = vadd.f32 %v752, 1e-05
        %v769 = vadd.f32 %v753, 1e-05
        %v770 = vadd.f32 %v754, 1e-05
        %v771 = vadd.f32 %v755, 1e-05
        %v772 = vadd.f32 %v756, 1e-05
        %v773 = vrsqrt.pop %v757
        %v774 = vmul.f32 %v773, %v757
        %v775 = vmul.f32 %v774, %v773
        %v776 = vmul.f32 0.5, %v775
        %v777 = vsub.f32 1.5, %v776
        %v778 = vmul.f32 %v773, %v777
        %vm779 = vweird.f32 %v757
        %vm780 = vweird.f32 %v773
        %vm781 = vmor %vm779, %vm780
        %v782 = vsel %vm781, %v773, %v778
        %v783 = vrsqrt.pop %v758
        %v784 = vmul.f32 %v783, %v758
        %v785 = vmul.f32 %v784, %v783
        %v786 = vmul.f32 0.5, %v785
        %v787 = vsub.f32 1.5, %v786
        %v788 = vmul.f32 %v783, %v787
        %vm789 = vweird.f32 %v758
        %vm790 = vweird.f32 %v783
        %vm791 = vmor %vm789, %vm790
        %v792 = vsel %vm791, %v783, %v788
        %v793 = vrsqrt.pop %v759
        %v794 = vmul.f32 %v793, %v759
        %v795 = vmul.f32 %v794, %v793
        %v796 = vmul.f32 0.5, %v795
        %v797 = vsub.f32 1.5, %v796
        %v798 = vmul.f32 %v793, %v797
        %vm799 = vweird.f32 %v759
        %vm800 = vweird.f32 %v793
        %vm801 = vmor %vm799, %vm800
        %v802 = vsel %vm801, %v793, %v798
        %v803 = vrsqrt.pop %v760
        %v804 = vmul.f32 %v803, %v760
        %v805 = vmul.f32 %v804, %v803
        %v806 = vmul.f32 0.5, %v805
        %v807 = vsub.f32 1.5, %v806
        %v808 = vmul.f32 %v803, %v807
        %vm809 = vweird.f32 %v760
        %vm810 = vweird.f32 %v803
        %vm811 = vmor %vm809, %vm810
        %v812 = vsel %vm811, %v803, %v808
        %v813 = vrsqrt.pop %v761
        %v814 = vmul.f32 %v813, %v761
        %v815 = vmul.f32 %v814, %v813
        %v816 = vmul.f32 0.5, %v815
        %v817 = vsub.f32 1.5, %v816
        %v818 = vmul.f32 %v813, %v817
        %vm819 = vweird.f32 %v761
        %vm820 = vweird.f32 %v813
        %vm821 = vmor %vm819, %vm820
        %v822 = vsel %vm821, %v813, %v818
        %v823 = vrsqrt.pop %v762
        %v824 = vmul.f32 %v823, %v762
        %v825 = vmul.f32 %v824, %v823
        %v826 = vmul.f32 0.5, %v825
        %v827 = vsub.f32 1.5, %v826
        %v828 = vmul.f32 %v823, %v827
        %vm829 = vweird.f32 %v762
        %vm830 = vweird.f32 %v823
        %vm831 = vmor %vm829, %vm830
        %v832 = vsel %vm831, %v823, %v828
        %v833 = vrsqrt.pop %v763
        %v834 = vmul.f32 %v833, %v763
        %v835 = vmul.f32 %v834, %v833
        %v836 = vmul.f32 0.5, %v835
        %v837 = vsub.f32 1.5, %v836
        %v838 = vmul.f32 %v833, %v837
        %vm839 = vweird.f32 %v763
        %vm840 = vweird.f32 %v833
        %vm841 = vmor %vm839, %vm840
        %v842 = vsel %vm841, %v833, %v838
        %v843 = vrsqrt.pop %v764
        %v844 = vmul.f32 %v843, %v764
        %v845 = vmul.f32 %v844, %v843
        %v846 = vmul.f32 0.5, %v845
        %v847 = vsub.f32 1.5, %v846
        %v848 = vmul.f32 %v843, %v847
        %vm849 = vweird.f32 %v764
        %vm850 = vweird.f32 %v843
        %vm851 = vmor %vm849, %vm850
        %v852 = vsel %vm851, %v843, %v848
        %v853 = vrsqrt.pop %v765
        %v854 = vmul.f32 %v853, %v765
        %v855 = vmul.f32 %v854, %v853
        %v856 = vmul.f32 0.5, %v855
        %v857 = vsub.f32 1.5, %v856
        %v858 = vmul.f32 %v853, %v857
        %vm859 = vweird.f32 %v765
        %vm860 = vweird.f32 %v853
        %vm861 = vmor %vm859, %vm860
        %v862 = vsel %vm861, %v853, %v858
        %v863 = vrsqrt.pop %v766
        %v864 = vmul.f32 %v863, %v766
        %v865 = vmul.f32 %v864, %v863
        %v866 = vmul.f32 0.5, %v865
        %v867 = vsub.f32 1.5, %v866
        %v868 = vmul.f32 %v863, %v867
        %vm869 = vweird.f32 %v766
        %vm870 = vweird.f32 %v863
        %vm871 = vmor %vm869, %vm870
        %v872 = vsel %vm871, %v863, %v868
        %v873 = vrsqrt.pop %v767
        %v874 = vmul.f32 %v873, %v767
        %v875 = vmul.f32 %v874, %v873
        %v876 = vmul.f32 0.5, %v875
        %v877 = vsub.f32 1.5, %v876
        %v878 = vmul.f32 %v873, %v877
        %vm879 = vweird.f32 %v767
        %vm880 = vweird.f32 %v873
        %vm881 = vmor %vm879, %vm880
        %v882 = vsel %vm881, %v873, %v878
        %v883 = vrsqrt.pop %v768
        %v884 = vmul.f32 %v883, %v768
        %v885 = vmul.f32 %v884, %v883
        %v886 = vmul.f32 0.5, %v885
        %v887 = vsub.f32 1.5, %v886
        %v888 = vmul.f32 %v883, %v887
        %vm889 = vweird.f32 %v768
        %vm890 = vweird.f32 %v883
        %vm891 = vmor %vm889, %vm890
        %v892 = vsel %vm891, %v883, %v888
        %v893 = vrsqrt.pop %v769
        %v894 = vmul.f32 %v893, %v769
        %v895 = vmul.f32 %v894, %v893
        %v896 = vmul.f32 0.5, %v895
        %v897 = vsub.f32 1.5, %v896
        %v898 = vmul.f32 %v893, %v897
        %vm899 = vweird.f32 %v769
        %vm900 = vweird.f32 %v893
        %vm901 = vmor %vm899, %vm900
        %v902 = vsel %vm901, %v893, %v898
        %v903 = vrsqrt.pop %v770
        %v904 = vmul.f32 %v903, %v770
        %v905 = vmul.f32 %v904, %v903
        %v906 = vmul.f32 0.5, %v905
        %v907 = vsub.f32 1.5, %v906
        %v908 = vmul.f32 %v903, %v907
        %vm909 = vweird.f32 %v770
        %vm910 = vweird.f32 %v903
        %vm911 = vmor %vm909, %vm910
        %v912 = vsel %vm911, %v903, %v908
        %v913 = vrsqrt.pop %v771
        %v914 = vmul.f32 %v913, %v771
        %v915 = vmul.f32 %v914, %v913
        %v916 = vmul.f32 0.5, %v915
        %v917 = vsub.f32 1.5, %v916
        %v918 = vmul.f32 %v913, %v917
        %vm919 = vweird.f32 %v771
        %vm920 = vweird.f32 %v913
        %vm921 = vmor %vm919, %vm920
        %v922 = vsel %vm921, %v913, %v918
        %v923 = vrsqrt.pop %v772
        %v924 = vmul.f32 %v923, %v772
        %v925 = vmul.f32 %v924, %v923
        %v926 = vmul.f32 0.5, %v925
        %v927 = vsub.f32 1.5, %v926
        %v928 = vmul.f32 %v923, %v927
        %vm929 = vweird.f32 %v772
        %vm930 = vweird.f32 %v923
        %vm931 = vmor %vm929, %vm930
        %v932 = vsel %vm931, %v923, %v928
        %v933 = vmul.f32 %v629, %v782
        %v934 = vmul.f32 %v630, %v782
        %v935 = vmul.f32 %v631, %v792
        %v936 = vmul.f32 %v632, %v792
        %v937 = vmul.f32 %v633, %v802
        %v938 = vmul.f32 %v634, %v802
        %v939 = vmul.f32 %v635, %v812
        %v940 = vmul.f32 %v636, %v812
        %v941 = vmul.f32 %v637, %v822
        %v942 = vmul.f32 %v638, %v822
        %v943 = vmul.f32 %v639, %v832
        %v944 = vmul.f32 %v640, %v832
        %v945 = vmul.f32 %v641, %v842
        %v946 = vmul.f32 %v642, %v842
        %v947 = vmul.f32 %v643, %v852
        %v948 = vmul.f32 %v644, %v852
        %v949 = vmul.f32 %v645, %v862
        %v950 = vmul.f32 %v646, %v862
        %v951 = vmul.f32 %v647, %v872
        %v952 = vmul.f32 %v648, %v872
        %v953 = vmul.f32 %v649, %v882
        %v954 = vmul.f32 %v650, %v882
        %v955 = vmul.f32 %v651, %v892
        %v956 = vmul.f32 %v652, %v892
        %v957 = vmul.f32 %v653, %v902
        %v958 = vmul.f32 %v654, %v902
        %v959 = vmul.f32 %v655, %v912
        %v960 = vmul.f32 %v656, %v912
        %v961 = vmul.f32 %v657, %v922
        %v962 = vmul.f32 %v658, %v922
        %v963 = vmul.f32 %v659, %v932
        %v964 = vmul.f32 %v660, %v932
        %v965 = vperm.slane %v372, 1
        %v966 = vperm.slane %v372, 5
        %v969 = vperm.slane %v965, 1
        %v970 = vperm.slane %v966, 1
        %v971 = vmul.f32 %v933, %v969
        %v972 = vmul.f32 %v934, %v970
        %v973 = vmul.f32 %v935, %v969
        %v974 = vmul.f32 %v936, %v970
        %v975 = vmul.f32 %v937, %v969
        %v976 = vmul.f32 %v938, %v970
        %v977 = vmul.f32 %v939, %v969
        %v978 = vmul.f32 %v940, %v970
        %v979 = vmul.f32 %v941, %v969
        %v980 = vmul.f32 %v942, %v970
        %v981 = vmul.f32 %v943, %v969
        %v982 = vmul.f32 %v944, %v970
        %v983 = vmul.f32 %v945, %v969
        %v984 = vmul.f32 %v946, %v970
        %v985 = vmul.f32 %v947, %v969
        %v986 = vmul.f32 %v948, %v970
        %v987 = vmul.f32 %v949, %v969
        %v988 = vmul.f32 %v950, %v970
        %v989 = vmul.f32 %v951, %v969
        %v990 = vmul.f32 %v952, %v970
        %v991 = vmul.f32 %v953, %v969
        %v992 = vmul.f32 %v954, %v970
        %v993 = vmul.f32 %v955, %v969
        %v994 = vmul.f32 %v956, %v970
        %v995 = vmul.f32 %v957, %v969
        %v996 = vmul.f32 %v958, %v970
        %v997 = vmul.f32 %v959, %v969
        %v998 = vmul.f32 %v960, %v970
        %v999 = vmul.f32 %v961, %v969
        %v1000 = vmul.f32 %v962, %v970
        %v1001 = vmul.f32 %v963, %v969
        %v1002 = vmul.f32 %v964, %v970
        %v1003 = vperm.slane %v372, 2
        %v1004 = vperm.slane %v372, 6
        %v1007 = vperm.slane %v1003, 2
        %v1008 = vperm.slane %v1004, 2
        %v1009 = vadd.f32 %v971, %v1007
        %v1010 = vadd.f32 %v972, %v1008
        %v1011 = vadd.f32 %v973, %v1007
        %v1012 = vadd.f32 %v974, %v1008
        %v1013 = vadd.f32 %v975, %v1007
        %v1014 = vadd.f32 %v976, %v1008
        %v1015 = vadd.f32 %v977, %v1007
        %v1016 = vadd.f32 %v978, %v1008
        %v1017 = vadd.f32 %v979, %v1007
        %v1018 = vadd.f32 %v980, %v1008
        %v1019 = vadd.f32 %v981, %v1007
        %v1020 = vadd.f32 %v982, %v1008
        %v1021 = vadd.f32 %v983, %v1007
        %v1022 = vadd.f32 %v984, %v1008
        %v1023 = vadd.f32 %v985, %v1007
        %v1024 = vadd.f32 %v986, %v1008
        %v1025 = vadd.f32 %v987, %v1007
        %v1026 = vadd.f32 %v988, %v1008
        %v1027 = vadd.f32 %v989, %v1007
        %v1028 = vadd.f32 %v990, %v1008
        %v1029 = vadd.f32 %v991, %v1007
        %v1030 = vadd.f32 %v992, %v1008
        %v1031 = vadd.f32 %v993, %v1007
        %v1032 = vadd.f32 %v994, %v1008
        %v1033 = vadd.f32 %v995, %v1007
        %v1034 = vadd.f32 %v996, %v1008
        %v1035 = vadd.f32 %v997, %v1007
        %v1036 = vadd.f32 %v998, %v1008
        %v1037 = vadd.f32 %v999, %v1007
        %v1038 = vadd.f32 %v1000, %v1008
        %v1039 = vadd.f32 %v1001, %v1007
        %v1040 = vadd.f32 %v1002, %v1008
        %v1041 = vpack.c.bf16 %v1010, %v1009
        %v1042 = vpack.c.bf16 %v1012, %v1011
        %v1043 = vpack.c.bf16 %v1014, %v1013
        %v1044 = vpack.c.bf16 %v1016, %v1015
        %v1045 = vpack.c.bf16 %v1018, %v1017
        %v1046 = vpack.c.bf16 %v1020, %v1019
        %v1047 = vpack.c.bf16 %v1022, %v1021
        %v1048 = vpack.c.bf16 %v1024, %v1023
        %v1049 = vpack.c.bf16 %v1026, %v1025
        %v1050 = vpack.c.bf16 %v1028, %v1027
        %v1051 = vpack.c.bf16 %v1030, %v1029
        %v1052 = vpack.c.bf16 %v1032, %v1031
        %v1053 = vpack.c.bf16 %v1034, %v1033
        %v1054 = vpack.c.bf16 %v1036, %v1035
        %v1055 = vpack.c.bf16 %v1038, %v1037
        %v1056 = vpack.c.bf16 %v1040, %v1039
        %1057 = vst [vmem:[%s265] sm:$0xff] %v1041
        %1058 = vst [vmem:[%s265 + $0x8] sm:$0xff] %v1042
        %1059 = vst [vmem:[%s265 + $0x10] sm:$0xff] %v1043
        %1060 = vst [vmem:[%s265 + $0x18] sm:$0xff] %v1044
        %1061 = vst [vmem:[%s265 + $0x20] sm:$0xff] %v1045
        %1062 = vst [vmem:[%s265 + $0x28] sm:$0xff] %v1046
        %1063 = vst [vmem:[%s265 + $0x30] sm:$0xff] %v1047
        %1064 = vst [vmem:[%s265 + $0x38] sm:$0xff] %v1048
        %1065 = vst [vmem:[%s265 + $0x40] sm:$0xff] %v1049
        %1066 = vst [vmem:[%s265 + $0x48] sm:$0xff] %v1050
        %1067 = vst [vmem:[%s265 + $0x50] sm:$0xff] %v1051
        %1068 = vst [vmem:[%s265 + $0x58] sm:$0xff] %v1052
        %1069 = vst [vmem:[%s265 + $0x60] sm:$0xff] %v1053
        %1070 = vst [vmem:[%s265 + $0x68] sm:$0xff] %v1054
        %1071 = vst [vmem:[%s265 + $0x70] sm:$0xff] %v1055
        %1072 = vst [vmem:[%s265 + $0x78] sm:$0xff] %v1056
        %s1073 = sand.u32 %s120, 1
        %s1074 = scalar_lea.sflag [#allocation4], %s1073
        %s1075 = sand.u32 %s120, 1
        %s1076 = smul.addr %s1075, 128
        %s1077 = scalar_lea.vmem [#allocation10], %s1076
        // Predicated region
        $region53: #{tpu_custom_call.1} parent=35 // pred_check
          %p1078 = pneg %p130
        $region54: #{tpu_custom_call.1} parent=35 // pred_check_branch
          %1080 = sbr.rel (%p1078) target = $region56
        $region55: #{tpu_custom_call.1} parent=35 // pred_region
          %s1081 = smul.u32 16, %s23
          %1083 = vsyncadd %s1074, 0
          %s1084 = smul.addr %s1081, 2
          %s1085 = smul.addr %s1084, 4
          %s1086 = scalar_lea.hbm %s4, %s1085
          %s1087 = sshll.u32 %s1077, 4
          %s1088 = int_to_ptr.vmem [resolvable:$true] %s1087
          %s1089 = sshll.u32 %s1086, 4
          %s1090 = int_to_ptr.hbm [resolvable:$true] %s1089
          %1095 = dma.vmem_to_hbm [thread:$0]  %s1088, 2048, %s1090, %s1074, 128, 128, 8
        $region56: #{tpu_custom_call.1} parent=35 // pred_fallthru
          _
      $region36: #{tpu_custom_call.1} parent=5 // pred_fallthru
        _
      %p1096 = scmp.le.s32.totalorder 2, %s18
      // Predicated region
      $region57: #{tpu_custom_call.1} parent=5 // pred_check
        %p1097 = pneg %p1096
      $region58: #{tpu_custom_call.1} parent=5 // pred_check_branch
        %1099 = sbr.rel (%p1097) target = $region60
      $region59: #{tpu_custom_call.1} parent=5 // pred_region
        %s1100 = ssub.s32 %s18, 2
        // Predicated region
        $region61: #{tpu_custom_call.1} parent=59 // pred_check
          %p1101 = pneg %p136
        $region62: #{tpu_custom_call.1} parent=59 // pred_check_branch
          %1103 = sbr.rel (%p1101) target = $region64
        $region63: #{tpu_custom_call.1} parent=59 // pred_region
          %s1104 = sand.u32 %s121, 1
          %s1105 = scalar_lea.sflag [#allocation4], %s1104
          %s1106 = sand.u32 %s121, 1
          %s1107 = smul.addr %s1106, 128
          %s1108 = scalar_lea.vmem [#allocation10], %s1107
          %1110 = dma.done %s1105, 2048
        $region64: #{tpu_custom_call.1} parent=59 // pred_fallthru
          _
      $region60: #{tpu_custom_call.1} parent=5 // pred_fallthru
        _
    $region6: #{tpu_custom_call.1} parent=1 // loop_footer
      %s22 = sadd.s32 1, %s18
    $region7: #{tpu_custom_call.1} parent=1 // loop_footer_branch
      %17 = sbr.rel target = $region3
    $region8: #{tpu_custom_call.1} parent=1 // loop_exit
      _
    %1111 = vsyncpa [#allocation3], 1
    %s1112 = scalar_lea.sflag [#allocation3], 1
    %1113 = vsyncpa %s1112, 1
    %1114 = vsyncpa [#allocation6], 1
    %1115 = vsyncpa [#allocation9], 1
    %1116 = vsyncpa [#allocation4], 1
    %s1117 = scalar_lea.sflag [#allocation4], 1
    %1118 = vsyncpa %s1117, 1

</llo_original>
